<compile_context>
chip_gen: v5e
topology: v5e:2x2
jax: 0.10.0
libtpu: 0.0.40
codegen_flags: <defaults>
</compile_context>

<pallas_src>
import functools

import jax
import jax.numpy as jnp
from jax.experimental import pallas as pl
from jax.experimental.pallas import tpu as pltpu


def _sdpa_kernel(*refs, scale, has_mask):
    if has_mask:
        q_ref, k_ref, v_ref, m_ref, out_ref, attn_ref = refs
    else:
        q_ref, k_ref, v_ref, out_ref, attn_ref = refs
        m_ref = None

    q = q_ref[...]  # (G, TQ, Dk) native dtype
    k = k_ref[...]  # (G, Lk, Dk) native dtype
    v = v_ref[...]  # (G, Lk, Dv) native dtype

    # scores = (q @ k^T) / temperature  -> (G, TQ, Lk), f32 accumulation (MXU).
    s = jnp.einsum("gqd,gkd->gqk", q, k, preferred_element_type=jnp.float32)
    s = s * jnp.float32(scale)

    if has_mask:
        # masked_fill(mask == 0, -1e9) on the scaled scores.
        s = jnp.where(m_ref[...] != 0.0, s, jnp.float32(-1e9))

    # Numerically-stable softmax over the last axis (f32 VPU/EUP math).
    s = s - jnp.max(s, axis=-1, keepdims=True)
    p = jnp.exp(s)
    inv = pl.reciprocal(jnp.sum(p, axis=-1, keepdims=True), approx=True)  # EUP
    p = p * inv

    attn_ref[...] = p.astype(attn_ref.dtype)
    # output = attn @ v -> (G, TQ, Dv); feed p in v's dtype, accumulate in f32.
    out = jnp.einsum("gqk,gkd->gqd", p.astype(v.dtype), v,
                     preferred_element_type=jnp.float32)
    out_ref[...] = out.astype(out_ref.dtype)


def _choose_tiles(BH, Lq, Lk, Dk, Dv, itemsize, has_mask,
                  target_bytes=3 * 1024 * 1024):
    """Pick (G heads per step, TQ query-tile).

    Blocks per step stay around `target_bytes` so the double-buffered working
    set fits the default scoped VMEM on every generation while staying large
    enough to amortize the ~0.35 us per-step overhead.
    """
    # Query tile: full Lq when modest, else a multiple-of-8 tile.
    TQ = Lq if Lq <= 1024 else 1024
    # Per-head block bytes: q, k, v, out (native dtype), attn out (native),
    # optional f32 mask, plus f32 score/prob scratch the compiler keeps live.
    per_head = (itemsize * (TQ * Dk + Lk * Dk + Lk * Dv + TQ * Dv + TQ * Lk)
                + 4 * TQ * Lk                      # f32 scores/probs
                + (4 * TQ * Lk if has_mask else 0))
    G = max(1, min(BH, int(target_bytes // max(per_head, 1))))
    while BH % G != 0:  # keep the grid exact (no padded head blocks)
        G -= 1
    return G, TQ


def scaled_dot_product_attention(q, k, v, temperature, mask=None):
    """q: [B,H,Lq,Dk], k: [B,H,Lk,Dk], v: [B,H,Lk,Dv] -> (output, attn)."""
    B, H, Lq, Dk = q.shape
    _, _, Lk, Dk2 = k.shape
    Dv = v.shape[-1]
    assert Dk == Dk2

    BH = B * H
    q2 = q.reshape(BH, Lq, Dk)
    k2 = k.reshape(BH, Lk, Dk)
    v2 = v.reshape(BH, Lk, Dv)

    has_mask = mask is not None
    G, TQ = _choose_tiles(BH, Lq, Lk, Dk, Dv, q.dtype.itemsize, has_mask)
    grid = (BH // G, pl.cdiv(Lq, TQ))

    inputs = [q2, k2, v2]
    in_specs = [
        pl.BlockSpec((G, TQ, Dk), lambda b, t: (b, t, 0)),
        pl.BlockSpec((G, Lk, Dk), lambda b, t: (b, 0, 0)),
        pl.BlockSpec((G, Lk, Dv), lambda b, t: (b, 0, 0)),
    ]

    bytes_accessed = q2.nbytes + k2.nbytes + v2.nbytes
    if has_mask:
        m = jnp.broadcast_to(mask, (B, H, Lq, Lk)).astype(jnp.float32)
        m2 = m.reshape(BH, Lq, Lk)
        inputs.append(m2)
        in_specs.append(pl.BlockSpec((G, TQ, Lk), lambda b, t: (b, t, 0)))
        bytes_accessed += m2.nbytes
    # outputs: out (BH, Lq, Dv) + attn (BH, Lq, Lk), both in q.dtype
    bytes_accessed += q.dtype.itemsize * BH * Lq * (Dv + Lk)

    kernel = functools.partial(
        _sdpa_kernel, scale=1.0 / float(temperature), has_mask=has_mask)

    cost = pl.CostEstimate(
        flops=2 * BH * Lq * Lk * (Dk + Dv) + 4 * BH * Lq * Lk,
        transcendentals=BH * Lq * Lk,
        bytes_accessed=bytes_accessed,
    )

    out2, attn2 = pl.pallas_call(
        kernel,
        out_shape=(
            jax.ShapeDtypeStruct((BH, Lq, Dv), q.dtype),
            jax.ShapeDtypeStruct((BH, Lq, Lk), q.dtype),
        ),
        grid_spec=pltpu.PrefetchScalarGridSpec(
            num_scalar_prefetch=0,
            grid=grid,
            in_specs=in_specs,
            out_specs=[
                pl.BlockSpec((G, TQ, Dv), lambda b, t: (b, t, 0)),
                pl.BlockSpec((G, TQ, Lk), lambda b, t: (b, t, 0)),
            ],
        ),
        compiler_params=pltpu.CompilerParams(
            dimension_semantics=("parallel", "parallel"),
            vmem_limit_bytes=32 * 1024 * 1024),
        cost_estimate=cost,
    )(*inputs)

    return out2.reshape(B, H, Lq, Dv), attn2.reshape(B, H, Lq, Lk)


def _reference(q, k, v, temperature, mask=None):
    attn = jnp.matmul(q / temperature, jnp.swapaxes(k, 2, 3))
    if mask is not None:
        attn = jnp.where(mask == 0, -1e9, attn)
    attn = jax.nn.softmax(attn, axis=-1)
    output = jnp.matmul(attn, v)
    return output, attn


if __name__ == "__main__":
    key = jax.random.PRNGKey(0)
    kq, kk, kv, km = jax.random.split(key, 4)

    # Small shapes consistent with the module's forward.
    B, H, Lq, Lk, Dk, Dv = 2, 2, 8, 8, 32, 32
    temperature = float(Dk) ** 0.5  # typical "d_k ** 0.5" temperature

    q = jax.random.normal(kq, (B, H, Lq, Dk), dtype=jnp.float32)
    k = jax.random.normal(kk, (B, H, Lk, Dk), dtype=jnp.float32)
    v = jax.random.normal(kv, (B, H, Lk, Dv), dtype=jnp.float32)

    # Tolerances relaxed (2e-3) to cover the approximate EUP reciprocal.
    TOL = dict(atol=2e-3, rtol=2e-3)

    # mask=None path
    out, attn = scaled_dot_product_attention(q, k, v, temperature)
    jax.block_until_ready((out, attn))
    out_ref, attn_ref = _reference(q, k, v, temperature)
    assert out.shape == (B, H, Lq, Dv) and attn.shape == (B, H, Lq, Lk)
    assert jnp.allclose(out, out_ref, **TOL)
    assert jnp.allclose(attn, attn_ref, **TOL)

    # masked path (mask broadcast over heads, as in the PyTorch module usage)
    mask = (jax.random.uniform(km, (B, 1, Lq, Lk)) > 0.3).astype(jnp.float32)
    mask = mask.at[..., 0].set(1.0)  # keep at least one valid key per row
    out_m, attn_m = scaled_dot_product_attention(q, k, v, temperature, mask=mask)
    jax.block_until_ready((out_m, attn_m))
    out_mr, attn_mr = _reference(q, k, v, temperature, mask=mask)
    assert jnp.allclose(out_m, out_mr, **TOL)
    assert jnp.allclose(attn_m, attn_mr, **TOL)

    # TODO(synk): attn_dropout is stored by the PyTorch module but never applied
    # in its forward, so no dropout is implemented here (matches the spec).
    print("KERNEL_OK")
</pallas_src>

<mosaic_0001>
module attributes {stable_mosaic.version = 11 : i64} {
  func.func @_sdpa_kernel(%arg0: i32, %arg1: i32, %arg2: memref<4x8x32xf32, #tpu.memory_space<vmem>>, %arg3: memref<4x8x32xf32, #tpu.memory_space<vmem>>, %arg4: memref<4x8x32xf32, #tpu.memory_space<vmem>>, %arg5: memref<4x8x32xf32, #tpu.memory_space<vmem>>, %arg6: memref<4x8x8xf32, #tpu.memory_space<vmem>>) attributes {dimension_semantics = [#tpu.dimension_semantics<parallel>, #tpu.dimension_semantics<parallel>], iteration_bounds = array<i64: 1, 1>, scalar_prefetch = 0 : i64, scratch_operands = 0 : i64, tpu.core_type = #tpu.core_type<tc>, window_params = [{transform_indices = @transform_0, window_bounds = array<i64: 4, 8, 32>}, {transform_indices = @transform_1, window_bounds = array<i64: 4, 8, 32>}, {transform_indices = @transform_2, window_bounds = array<i64: 4, 8, 32>}, {transform_indices = @transform_3, window_bounds = array<i64: 4, 8, 32>}, {transform_indices = @transform_4, window_bounds = array<i64: 4, 8, 8>}]} {
    %c0 = arith.constant 0 : index
    %c0_0 = arith.constant 0 : index
    %c0_1 = arith.constant 0 : index
    %0 = vector.load %arg2[%c0, %c0_0, %c0_1] : memref<4x8x32xf32, #tpu.memory_space<vmem>>, vector<4x8x32xf32>
    %c0_2 = arith.constant 0 : index
    %c0_3 = arith.constant 0 : index
    %c0_4 = arith.constant 0 : index
    %1 = vector.load %arg3[%c0_2, %c0_3, %c0_4] : memref<4x8x32xf32, #tpu.memory_space<vmem>>, vector<4x8x32xf32>
    %c0_5 = arith.constant 0 : index
    %c0_6 = arith.constant 0 : index
    %c0_7 = arith.constant 0 : index
    %2 = vector.load %arg4[%c0_5, %c0_6, %c0_7] : memref<4x8x32xf32, #tpu.memory_space<vmem>>, vector<4x8x32xf32>
    "tpu.trace_start"() <{level = 10 : i32, message = "gqd,gkd->gqk"}> : () -> ()
    %cst = arith.constant dense<0.000000e+00> : vector<4x8x8xf32>
    %3 = tpu.matmul %0, %1, %cst {dimension_numbers = #tpu.dot_dimension_numbers<[2], [2], [1], [1], [0, 0, 0, 1, 1, 1], [0], [0]>} : vector<4x8x32xf32>, vector<4x8x32xf32>, vector<4x8x8xf32> -> vector<4x8x8xf32>
    "tpu.trace_stop"() : () -> ()
    %cst_8 = arith.constant 0.176776692 : f32
    %4 = vector.broadcast %cst_8 : f32 to vector<4x8x8xf32>
    %5 = arith.mulf %3, %4 : vector<4x8x8xf32>
    %cst_9 = arith.constant dense<0xFF800000> : vector<4x8xf32>
    %6 = vector.multi_reduction <maximumf>, %5, %cst_9 [2] : vector<4x8x8xf32> to vector<4x8xf32>
    %7 = vector.shape_cast %6 : vector<4x8xf32> to vector<4x8x1xf32>
    %8 = vector.broadcast %7 : vector<4x8x1xf32> to vector<4x8x8xf32>
    %9 = arith.subf %5, %8 : vector<4x8x8xf32>
    %10 = math.exp %9 : vector<4x8x8xf32>
    %cst_10 = arith.constant dense<0.000000e+00> : vector<4x8xf32>
    %11 = vector.multi_reduction <add>, %10, %cst_10 [2] : vector<4x8x8xf32> to vector<4x8xf32>
    %12 = vector.shape_cast %11 : vector<4x8xf32> to vector<4x8x1xf32>
    %13 = tpu.reciprocal %12 {approx = true} : vector<4x8x1xf32> -> vector<4x8x1xf32>
    %14 = vector.broadcast %13 : vector<4x8x1xf32> to vector<4x8x8xf32>
    %15 = arith.mulf %10, %14 : vector<4x8x8xf32>
    %c0_11 = arith.constant 0 : index
    %c0_12 = arith.constant 0 : index
    %c0_13 = arith.constant 0 : index
    %16 = vector.load %arg6[%c0_11, %c0_12, %c0_13] : memref<4x8x8xf32, #tpu.memory_space<vmem>>, vector<4x8x8xf32>
    tpu.vector_store %arg6[%c0_11, %c0_12, %c0_13], %15 {strides = array<i32>} : memref<4x8x8xf32, #tpu.memory_space<vmem>>, vector<4x8x8xf32>,
    "tpu.trace_start"() <{level = 10 : i32, message = "gqk,gkd->gqd"}> : () -> ()
    %cst_14 = arith.constant dense<0.000000e+00> : vector<4x8x32xf32>
    %17 = tpu.matmul %15, %2, %cst_14 {dimension_numbers = #tpu.dot_dimension_numbers<[2], [1], [1], [2], [0, 0, 0, 1, 1, 2], [0], [0]>} : vector<4x8x8xf32>, vector<4x8x32xf32>, vector<4x8x32xf32> -> vector<4x8x32xf32>
    "tpu.trace_stop"() : () -> ()
    %c0_15 = arith.constant 0 : index
    %c0_16 = arith.constant 0 : index
    %c0_17 = arith.constant 0 : index
    %18 = vector.load %arg5[%c0_15, %c0_16, %c0_17] : memref<4x8x32xf32, #tpu.memory_space<vmem>>, vector<4x8x32xf32>
    tpu.vector_store %arg5[%c0_15, %c0_16, %c0_17], %17 {strides = array<i32>} : memref<4x8x32xf32, #tpu.memory_space<vmem>>, vector<4x8x32xf32>,
    return
  }
  func.func @transform_0(%arg0: i32, %arg1: i32) -> (i32, i32, i32) {
    %c0_i32 = arith.constant 0 : i32
    %c0_i32_0 = arith.constant 0 : i32
    return %arg0, %arg1, %c0_i32 : i32, i32, i32
  }
  func.func @transform_1(%arg0: i32, %arg1: i32) -> (i32, i32, i32) {
    %c0_i32 = arith.constant 0 : i32
    %c0_i32_0 = arith.constant 0 : i32
    %c0_i32_1 = arith.constant 0 : i32
    return %arg0, %c0_i32, %c0_i32_0 : i32, i32, i32
  }
  func.func @transform_2(%arg0: i32, %arg1: i32) -> (i32, i32, i32) {
    %c0_i32 = arith.constant 0 : i32
    %c0_i32_0 = arith.constant 0 : i32
    %c0_i32_1 = arith.constant 0 : i32
    return %arg0, %c0_i32, %c0_i32_0 : i32, i32, i32
  }
  func.func @transform_3(%arg0: i32, %arg1: i32) -> (i32, i32, i32) {
    %c0_i32 = arith.constant 0 : i32
    %c0_i32_0 = arith.constant 0 : i32
    return %arg0, %arg1, %c0_i32 : i32, i32, i32
  }
  func.func @transform_4(%arg0: i32, %arg1: i32) -> (i32, i32, i32) {
    %c0_i32 = arith.constant 0 : i32
    %c0_i32_0 = arith.constant 0 : i32
    return %arg0, %arg1, %c0_i32 : i32, i32, i32
  }
}

</mosaic_0001>

<llo_original>
// kernel: tpu_custom_call.1
$region0: #{tpu_custom_call.1}
  #allocation0 [shape = 'u32[]', space=smem, size = 0x4, offset = 0x4, fixed_abs, tag = 'smem constant byte address 0x4 - core index']
  #allocation1 [shape = 'u32[72,128]{1,0:T(1,128)}', space=vmem, size = 0x9000, scoped, tag = 'internal scratch']
  %s0 = inlined_call_operand.hbm [shape: f32[4,8,32], index: 0, kind: input, shape index: {}]
  %s1 = inlined_call_operand.hbm [shape: f32[4,8,32], index: 1, kind: input, shape index: {}]
  %s2 = inlined_call_operand.hbm [shape: f32[4,8,32], index: 2, kind: input, shape index: {}]
  %s3 = inlined_call_operand.hbm [shape: f32[4,8,32], index: 3, kind: output, shape index: {0}]
  %s4 = inlined_call_operand.hbm [shape: f32[4,8,8], index: 4, kind: output, shape index: {1}]
  %5 = xla_tuple %s3, %s4
  %s6 = sld [smem:[#allocation0]]
  $region42: #{tpu_custom_call.1} parent=0
    _
  %s8 = ssub.s32 1, %s6
  %s9 = scalar_select 0, %s8, %s6
  $region1: #{tpu_custom_call.1} parent=0
    #allocation2 [shape = 'u8[16384]{0}', space=vmem, size = 0x4000, scoped, tag = 'input window, operand 0, single buffered']
    #allocation3 [shape = 's32[1]{0}', space=sflag, size = 0x4, scoped, tag = 'scoped memory for tpu_custom_call.1']
    #allocation4 [shape = 's32[1]{0}', space=sflag, size = 0x4, scoped, tag = 'scoped memory for tpu_custom_call.1']
    #allocation5 [shape = 'u8[16384]{0}', space=vmem, size = 0x4000, scoped, tag = 'input window, operand 1, single buffered']
    #allocation6 [shape = 's32[1]{0}', space=sflag, size = 0x4, scoped, tag = 'scoped memory for tpu_custom_call.1']
    #allocation7 [shape = 'u8[16384]{0}', space=vmem, size = 0x4000, scoped, tag = 'input window, operand 2, single buffered']
    #allocation8 [shape = 'u8[16384]{0}', space=vmem, size = 0x4000, scoped, tag = 'output window, operand 0, single buffered']
    #allocation9 [shape = 'u8[16384]{0}', space=vmem, size = 0x4000, scoped, tag = 'output window, operand 1, single buffered']
    #allocation10 [shape = 's32[1]{0}', space=sflag, size = 0x4, scoped, tag = 'scoped memory for tpu_custom_call.1']
    %10 = vsyncpa [#allocation3], 0
    %11 = vsyncpa [#allocation6], 0
    %12 = vsyncpa [#allocation4], 0
    %13 = vsyncpa [#allocation10], 0
    // Predicated region
    $region2: #{tpu_custom_call.1} parent=1 // pred_check
      _
    $region3: #{tpu_custom_call.1} parent=1 // pred_check_branch
      %15 = sbr.rel (0) target = $region5
    $region4: #{tpu_custom_call.1} parent=1 // pred_region
      %17 = vsyncadd [#allocation3], 0
      %s18 = sshll.u32 %s0, 4
      %s19 = int_to_ptr.hbm [resolvable:$true] %s18
      %s20 = sshll.u32 [#allocation2], 4
      %s21 = int_to_ptr.vmem [resolvable:$true] %s20
      %26 = dma.hbm_to_vmem [thread:$0]  %s19, 512, %s21, [#allocation3], 128, 128, 8
    $region5: #{tpu_custom_call.1} parent=1 // pred_fallthru
      _
    // Predicated region
    $region6: #{tpu_custom_call.1} parent=1 // pred_check
      _
    $region7: #{tpu_custom_call.1} parent=1 // pred_check_branch
      %28 = sbr.rel (0) target = $region9
    $region8: #{tpu_custom_call.1} parent=1 // pred_region
      %30 = vsyncadd [#allocation6], 0
      %s31 = sshll.u32 %s1, 4
      %s32 = int_to_ptr.hbm [resolvable:$true] %s31
      %s33 = sshll.u32 [#allocation5], 4
      %s34 = int_to_ptr.vmem [resolvable:$true] %s33
      %39 = dma.hbm_to_vmem [thread:$0]  %s32, 512, %s34, [#allocation6], 128, 128, 8
    $region9: #{tpu_custom_call.1} parent=1 // pred_fallthru
      _
    // Predicated region
    $region10: #{tpu_custom_call.1} parent=1 // pred_check
      _
    $region11: #{tpu_custom_call.1} parent=1 // pred_check_branch
      %41 = sbr.rel (0) target = $region13
    $region12: #{tpu_custom_call.1} parent=1 // pred_region
      %43 = vsyncadd [#allocation6], 0
      %s44 = sshll.u32 %s2, 4
      %s45 = int_to_ptr.hbm [resolvable:$true] %s44
      %s46 = sshll.u32 [#allocation7], 4
      %s47 = int_to_ptr.vmem [resolvable:$true] %s46
      %52 = dma.hbm_to_vmem [thread:$0]  %s45, 512, %s47, [#allocation6], 128, 128, 8
    $region13: #{tpu_custom_call.1} parent=1 // pred_fallthru
      _
    // Predicated region
    $region14: #{tpu_custom_call.1} parent=1 // pred_check
      _
    $region15: #{tpu_custom_call.1} parent=1 // pred_check_branch
      %54 = sbr.rel (0) target = $region17
    $region16: #{tpu_custom_call.1} parent=1 // pred_region
      %56 = dma.done [#allocation3], 512
    $region17: #{tpu_custom_call.1} parent=1 // pred_fallthru
      _
    // Predicated region
    $region18: #{tpu_custom_call.1} parent=1 // pred_check
      _
    $region19: #{tpu_custom_call.1} parent=1 // pred_check_branch
      %58 = sbr.rel (0) target = $region21
    $region20: #{tpu_custom_call.1} parent=1 // pred_region
      %60 = dma.done [#allocation6], 512
    $region21: #{tpu_custom_call.1} parent=1 // pred_fallthru
      _
    // Predicated region
    $region22: #{tpu_custom_call.1} parent=1 // pred_check
      _
    $region23: #{tpu_custom_call.1} parent=1 // pred_check_branch
      %62 = sbr.rel (0) target = $region25
    $region24: #{tpu_custom_call.1} parent=1 // pred_region
      %64 = dma.done [#allocation6], 512
    $region25: #{tpu_custom_call.1} parent=1 // pred_fallthru
      _
    %v65 = vld [vmem:[#allocation2] sm:$0xff]
    %v66 = vld [vmem:[#allocation2 + $0x8] sm:$0xff]
    %v67 = vld [vmem:[#allocation2 + $0x10] sm:$0xff]
    %v68 = vld [vmem:[#allocation2 + $0x18] sm:$0xff]
    %v69 = vld [vmem:[#allocation5] sm:$0xff]
    %v70 = vld [vmem:[#allocation5 + $0x8] sm:$0xff]
    %v71 = vld [vmem:[#allocation5 + $0x10] sm:$0xff]
    %v72 = vld [vmem:[#allocation5 + $0x18] sm:$0xff]
    %v73 = vld [vmem:[#allocation7] sm:$0xff]
    %v74 = vld [vmem:[#allocation7 + $0x8] sm:$0xff]
    %v75 = vld [vmem:[#allocation7 + $0x10] sm:$0xff]
    %v76 = vld [vmem:[#allocation7 + $0x18] sm:$0xff]
    %vm77 = vcmask 261120
    %v79 = vsel %vm77, %v65, 0
    %v82 = vsel %vm77, %v69, 0
    %84 = vmatpush.xpose.msra.mxu0 0.0
    %85 = vmatpush.xpose.msra.mxu0 0.0
    %86 = vmatpush.xpose.msra.mxu0 0.0
    %87 = vmatpush.xpose.msra.mxu0 0.0
    %88 = vmatpush.xpose.msra.mxu0 0.0
    %89 = vmatpush.xpose.msra.mxu0 0.0
    %90 = vmatpush.xpose.msra.mxu0 0.0
    %91 = vmatpush.xpose.msra.mxu0 0.0
    %92 = vmatpush.xpose.msra.mxu0 0.0
    %93 = vmatpush.xpose.msra.mxu0 0.0
    %94 = vmatpush.xpose.msra.mxu0 0.0
    %95 = vmatpush.xpose.msra.mxu0 0.0
    %96 = vmatpush.xpose.msra.mxu0 0.0
    %97 = vmatpush.xpose.msra.mxu0 0.0
    %98 = vmatpush.xpose.msra.mxu0 0.0
    %99 = vmatpush.xpose.msra.mxu0 %v82
    %100 = vmatmul.f32.gmra.mxu0 %v79
    %v101 = vpop.f32.mrf.mxu0
    %v102 = vadd.f32 0.0, %v101
    %103 = vdwg.mxu0
    %v105 = vsel %vm77, %v66, 0
    %v108 = vsel %vm77, %v70, 0
    %110 = vmatpush.xpose.msra.mxu0 0.0
    %111 = vmatpush.xpose.msra.mxu0 0.0
    %112 = vmatpush.xpose.msra.mxu0 0.0
    %113 = vmatpush.xpose.msra.mxu0 0.0
    %114 = vmatpush.xpose.msra.mxu0 0.0
    %115 = vmatpush.xpose.msra.mxu0 0.0
    %116 = vmatpush.xpose.msra.mxu0 0.0
    %117 = vmatpush.xpose.msra.mxu0 0.0
    %118 = vmatpush.xpose.msra.mxu0 0.0
    %119 = vmatpush.xpose.msra.mxu0 0.0
    %120 = vmatpush.xpose.msra.mxu0 0.0
    %121 = vmatpush.xpose.msra.mxu0 0.0
    %122 = vmatpush.xpose.msra.mxu0 0.0
    %123 = vmatpush.xpose.msra.mxu0 0.0
    %124 = vmatpush.xpose.msra.mxu0 0.0
    %125 = vmatpush.xpose.msra.mxu0 %v108
    %126 = vmatmul.f32.gmra.mxu0 %v105
    %v127 = vpop.f32.mrf.mxu0
    %v128 = vadd.f32 0.0, %v127
    %129 = vdwg.mxu0
    %v131 = vsel %vm77, %v67, 0
    %v134 = vsel %vm77, %v71, 0
    %136 = vmatpush.xpose.msra.mxu0 0.0
    %137 = vmatpush.xpose.msra.mxu0 0.0
    %138 = vmatpush.xpose.msra.mxu0 0.0
    %139 = vmatpush.xpose.msra.mxu0 0.0
    %140 = vmatpush.xpose.msra.mxu0 0.0
    %141 = vmatpush.xpose.msra.mxu0 0.0
    %142 = vmatpush.xpose.msra.mxu0 0.0
    %143 = vmatpush.xpose.msra.mxu0 0.0
    %144 = vmatpush.xpose.msra.mxu0 0.0
    %145 = vmatpush.xpose.msra.mxu0 0.0
    %146 = vmatpush.xpose.msra.mxu0 0.0
    %147 = vmatpush.xpose.msra.mxu0 0.0
    %148 = vmatpush.xpose.msra.mxu0 0.0
    %149 = vmatpush.xpose.msra.mxu0 0.0
    %150 = vmatpush.xpose.msra.mxu0 0.0
    %151 = vmatpush.xpose.msra.mxu0 %v134
    %152 = vmatmul.f32.gmra.mxu0 %v131
    %v153 = vpop.f32.mrf.mxu0
    %v154 = vadd.f32 0.0, %v153
    %155 = vdwg.mxu0
    %v157 = vsel %vm77, %v68, 0
    %v160 = vsel %vm77, %v72, 0
    %162 = vmatpush.xpose.msra.mxu0 0.0
    %163 = vmatpush.xpose.msra.mxu0 0.0
    %164 = vmatpush.xpose.msra.mxu0 0.0
    %165 = vmatpush.xpose.msra.mxu0 0.0
    %166 = vmatpush.xpose.msra.mxu0 0.0
    %167 = vmatpush.xpose.msra.mxu0 0.0
    %168 = vmatpush.xpose.msra.mxu0 0.0
    %169 = vmatpush.xpose.msra.mxu0 0.0
    %170 = vmatpush.xpose.msra.mxu0 0.0
    %171 = vmatpush.xpose.msra.mxu0 0.0
    %172 = vmatpush.xpose.msra.mxu0 0.0
    %173 = vmatpush.xpose.msra.mxu0 0.0
    %174 = vmatpush.xpose.msra.mxu0 0.0
    %175 = vmatpush.xpose.msra.mxu0 0.0
    %176 = vmatpush.xpose.msra.mxu0 0.0
    %177 = vmatpush.xpose.msra.mxu0 %v160
    %178 = vmatmul.f32.gmra.mxu0 %v157
    %v179 = vpop.f32.mrf.mxu0
    %v180 = vadd.f32 0.0, %v179
    %181 = vdwg.mxu0
    %v182 = vmul.f32 %v102, 0.17677669
    %v183 = vmul.f32 %v128, 0.17677669
    %v184 = vmul.f32 %v154, 0.17677669
    %v185 = vmul.f32 %v180, 0.17677669
    %vm186 = vcmask 64512
    %v187 = vsel %vm186, %v182, -inf
    %188 = vmax.xlane.f32.xlu0 %v187
    %v189 = vpop.xlane.xlu0 %188
    %v190 = vsel %vm186, %v183, -inf
    %191 = vmax.xlane.f32.xlu0 %v190
    %v192 = vpop.xlane.xlu0 %191
    %v193 = vsel %vm186, %v184, -inf
    %194 = vmax.xlane.f32.xlu0 %v193
    %v195 = vpop.xlane.xlu0 %194
    %v196 = vsel %vm186, %v185, -inf
    %197 = vmax.xlane.f32.xlu0 %v196
    %v198 = vpop.xlane.xlu0 %197
    %v199 = vsub.f32 %v182, %v189
    %v200 = vsub.f32 %v183, %v192
    %v201 = vsub.f32 %v184, %v195
    %v202 = vsub.f32 %v185, %v198
    %v203 = vmul.f32 %v199, 1.442695
    %v204 = vpow.pop %v203
    %v205 = vmul.f32 %v200, 1.442695
    %v206 = vpow.pop %v205
    %v207 = vmul.f32 %v201, 1.442695
    %v208 = vpow.pop %v207
    %v209 = vmul.f32 %v202, 1.442695
    %v210 = vpow.pop %v209
    %v211 = vsel %vm186, %v204, 0.0
    %212 = vadd.xlane.f32.xlu0 %v211
    %v213 = vpop.xlane.xlu0 %212
    %v214 = vsel %vm186, %v206, 0.0
    %215 = vadd.xlane.f32.xlu0 %v214
    %v216 = vpop.xlane.xlu0 %215
    %v217 = vsel %vm186, %v208, 0.0
    %218 = vadd.xlane.f32.xlu0 %v217
    %v219 = vpop.xlane.xlu0 %218
    %v220 = vsel %vm186, %v210, 0.0
    %221 = vadd.xlane.f32.xlu0 %v220
    %v222 = vpop.xlane.xlu0 %221
    %v223 = vrcp.pop %v213
    %v224 = vrcp.pop %v216
    %v225 = vrcp.pop %v219
    %v226 = vrcp.pop %v222
    %v227 = vmul.f32 %v204, %v223
    %v228 = vmul.f32 %v206, %v224
    %v229 = vmul.f32 %v208, %v225
    %v230 = vmul.f32 %v210, %v226
    %231 = vst.msk [vmem:[#allocation9] sm:$0xff] %vm186, %v227
    %232 = vst.msk [vmem:[#allocation9 + $0x8] sm:$0xff] %vm186, %v228
    %233 = vst.msk [vmem:[#allocation9 + $0x10] sm:$0xff] %vm186, %v229
    %234 = vst.msk [vmem:[#allocation9 + $0x18] sm:$0xff] %vm186, %v230
    %v236 = vsel %vm186, %v227, 0
    %238 = vmatpush.msra.mxu0 0.0
    %239 = vmatpush.msra.mxu0 0.0
    %240 = vmatpush.msra.mxu0 0.0
    %241 = vmatpush.msra.mxu0 0.0
    %242 = vmatpush.msra.mxu0 0.0
    %243 = vmatpush.msra.mxu0 0.0
    %244 = vmatpush.msra.mxu0 0.0
    %245 = vmatpush.msra.mxu0 0.0
    %246 = vmatpush.msra.mxu0 0.0
    %247 = vmatpush.msra.mxu0 0.0
    %248 = vmatpush.msra.mxu0 0.0
    %249 = vmatpush.msra.mxu0 0.0
    %250 = vmatpush.msra.mxu0 0.0
    %251 = vmatpush.msra.mxu0 0.0
    %252 = vmatpush.msra.mxu0 0.0
    %253 = vmatpush.msra.mxu0 %v73
    %254 = vmatmul.f32.gmra.mxu0 %v236
    %v255 = vpop.f32.mrf.mxu0
    %v256 = vadd.f32 0.0, %v255
    %257 = vdwg.mxu0
    %v259 = vsel %vm186, %v228, 0
    %261 = vmatpush.msra.mxu0 0.0
    %262 = vmatpush.msra.mxu0 0.0
    %263 = vmatpush.msra.mxu0 0.0
    %264 = vmatpush.msra.mxu0 0.0
    %265 = vmatpush.msra.mxu0 0.0
    %266 = vmatpush.msra.mxu0 0.0
    %267 = vmatpush.msra.mxu0 0.0
    %268 = vmatpush.msra.mxu0 0.0
    %269 = vmatpush.msra.mxu0 0.0
    %270 = vmatpush.msra.mxu0 0.0
    %271 = vmatpush.msra.mxu0 0.0
    %272 = vmatpush.msra.mxu0 0.0
    %273 = vmatpush.msra.mxu0 0.0
    %274 = vmatpush.msra.mxu0 0.0
    %275 = vmatpush.msra.mxu0 0.0
    %276 = vmatpush.msra.mxu0 %v74
    %277 = vmatmul.f32.gmra.mxu0 %v259
    %v278 = vpop.f32.mrf.mxu0
    %v279 = vadd.f32 0.0, %v278
    %280 = vdwg.mxu0
    %v282 = vsel %vm186, %v229, 0
    %284 = vmatpush.msra.mxu0 0.0
    %285 = vmatpush.msra.mxu0 0.0
    %286 = vmatpush.msra.mxu0 0.0
    %287 = vmatpush.msra.mxu0 0.0
    %288 = vmatpush.msra.mxu0 0.0
    %289 = vmatpush.msra.mxu0 0.0
    %290 = vmatpush.msra.mxu0 0.0
    %291 = vmatpush.msra.mxu0 0.0
    %292 = vmatpush.msra.mxu0 0.0
    %293 = vmatpush.msra.mxu0 0.0
    %294 = vmatpush.msra.mxu0 0.0
    %295 = vmatpush.msra.mxu0 0.0
    %296 = vmatpush.msra.mxu0 0.0
    %297 = vmatpush.msra.mxu0 0.0
    %298 = vmatpush.msra.mxu0 0.0
    %299 = vmatpush.msra.mxu0 %v75
    %300 = vmatmul.f32.gmra.mxu0 %v282
    %v301 = vpop.f32.mrf.mxu0
    %v302 = vadd.f32 0.0, %v301
    %303 = vdwg.mxu0
    %v305 = vsel %vm186, %v230, 0
    %307 = vmatpush.msra.mxu0 0.0
    %308 = vmatpush.msra.mxu0 0.0
    %309 = vmatpush.msra.mxu0 0.0
    %310 = vmatpush.msra.mxu0 0.0
    %311 = vmatpush.msra.mxu0 0.0
    %312 = vmatpush.msra.mxu0 0.0
    %313 = vmatpush.msra.mxu0 0.0
    %314 = vmatpush.msra.mxu0 0.0
    %315 = vmatpush.msra.mxu0 0.0
    %316 = vmatpush.msra.mxu0 0.0
    %317 = vmatpush.msra.mxu0 0.0
    %318 = vmatpush.msra.mxu0 0.0
    %319 = vmatpush.msra.mxu0 0.0
    %320 = vmatpush.msra.mxu0 0.0
    %321 = vmatpush.msra.mxu0 0.0
    %322 = vmatpush.msra.mxu0 %v76
    %323 = vmatmul.f32.gmra.mxu0 %v305
    %v324 = vpop.f32.mrf.mxu0
    %v325 = vadd.f32 0.0, %v324
    %326 = vdwg.mxu0
    %327 = vst.msk [vmem:[#allocation8] sm:$0xff] %vm77, %v256
    %328 = vst.msk [vmem:[#allocation8 + $0x8] sm:$0xff] %vm77, %v279
    %329 = vst.msk [vmem:[#allocation8 + $0x10] sm:$0xff] %vm77, %v302
    %330 = vst.msk [vmem:[#allocation8 + $0x18] sm:$0xff] %vm77, %v325
    // Predicated region
    $region26: #{tpu_custom_call.1} parent=1 // pred_check
      _
    $region27: #{tpu_custom_call.1} parent=1 // pred_check_branch
      %332 = sbr.rel (0) target = $region29
    $region28: #{tpu_custom_call.1} parent=1 // pred_region
      %334 = vsyncadd [#allocation4], 0
      %s335 = sshll.u32 [#allocation8], 4
      %s336 = int_to_ptr.vmem [resolvable:$true] %s335
      %s337 = sshll.u32 %s3, 4
      %s338 = int_to_ptr.hbm [resolvable:$true] %s337
      %343 = dma.vmem_to_hbm [thread:$0]  %s336, 512, %s338, [#allocation4], 128, 128, 8
    $region29: #{tpu_custom_call.1} parent=1 // pred_fallthru
      _
    // Predicated region
    $region30: #{tpu_custom_call.1} parent=1 // pred_check
      _
    $region31: #{tpu_custom_call.1} parent=1 // pred_check_branch
      %345 = sbr.rel (0) target = $region33
    $region32: #{tpu_custom_call.1} parent=1 // pred_region
      %347 = vsyncadd [#allocation10], 0
      %s348 = sshll.u32 [#allocation9], 4
      %s349 = int_to_ptr.vmem [resolvable:$true] %s348
      %s350 = sshll.u32 %s4, 4
      %s351 = int_to_ptr.hbm [resolvable:$true] %s350
      %356 = dma.vmem_to_hbm [thread:$0]  %s349, 512, %s351, [#allocation10], 128, 128, 8
    $region33: #{tpu_custom_call.1} parent=1 // pred_fallthru
      _
    // Predicated region
    $region34: #{tpu_custom_call.1} parent=1 // pred_check
      _
    $region35: #{tpu_custom_call.1} parent=1 // pred_check_branch
      %358 = sbr.rel (0) target = $region37
    $region36: #{tpu_custom_call.1} parent=1 // pred_region
      %360 = dma.done [#allocation4], 512
    $region37: #{tpu_custom_call.1} parent=1 // pred_fallthru
      _
    // Predicated region
    $region38: #{tpu_custom_call.1} parent=1 // pred_check
      _
    $region39: #{tpu_custom_call.1} parent=1 // pred_check_branch
      %362 = sbr.rel (0) target = $region41
    $region40: #{tpu_custom_call.1} parent=1 // pred_region
      %364 = dma.done [#allocation10], 512
    $region41: #{tpu_custom_call.1} parent=1 // pred_fallthru
      _
    %365 = vsyncpa [#allocation3], 1
    %366 = vsyncpa [#allocation6], 1
    %367 = vsyncpa [#allocation4], 1
    %368 = vsyncpa [#allocation10], 1

</llo_original>
